<compile_context>
chip_gen: v6e
topology: v6e:2x2x1
jax: 0.10.0
libtpu: 0.0.40
codegen_flags: <defaults>
</compile_context>

<pallas_src>
import numpy as np
import jax
import jax.numpy as jnp
from jax import lax
from jax.experimental import pallas as pl
from jax.experimental.pallas import tpu as pltpu

# ---------------------------------------------------------------------------
# Static network configuration (the PyTorch module implies fc1 has 256 inputs,
# so the spatial input must be 14x14: 14 ->conv3-> 12 ->pool-> 6 ->conv3-> 4
# ->pool-> 2 and 64*2*2 == 256).
# ---------------------------------------------------------------------------
N = 2                       # batch
CIN, HIN, WIN = 2, 14, 14   # input channels / spatial
K = 3                       # conv kernel size
C1, C2 = 32, 64             # conv output channels
HP1 = WP1 = 6               # spatial after conv1 + 2x2 pool
HP2 = WP2 = 2               # spatial after conv2 + 2x2 pool
FC1, NCLS = 100, 2

R1 = N * HP1 * WP1          # 72 rows per pool offset, stage 1
RB2 = 4 * HP2 * WP2 * N     # 32 rows per conv-kernel offset, stage 2 (no padding)
PB2 = HP2 * WP2 * N         # 8  rows per pool offset, stage 2


# ---------------------------------------------------------------------------
# The single fused Pallas kernel
# ---------------------------------------------------------------------------
def _convnet_kernel(p1_ref, w1_ref, sel2_ref, w2_ref, v1_ref, wfc2_ref,
                    bias_ref, out_ref):
    # Packed per-stage bias rows (kept f32; elementwise path stays f32).
    b1 = bias_ref[0:1, 0:C1]
    b2 = bias_ref[1:2, 0:C2]
    bfc1 = bias_ref[2:3, 0:FC1]
    bfc2 = bias_ref[3:4, 0:NCLS]

    # ---- stage 1: conv1 as ONE stacked bf16 matmul over the 4 pool offsets,
    #      2x2 max-pool = max of 4 aligned row blocks, bias once, ReLU.
    z1 = jnp.dot(p1_ref[...], w1_ref[...], preferred_element_type=jnp.float32)
    pooled1 = jnp.maximum(jnp.maximum(z1[0:R1], z1[R1:2 * R1]),
                          jnp.maximum(z1[2 * R1:3 * R1], z1[3 * R1:4 * R1]))
    y1 = jnp.maximum(pooled1 + b1, 0.0)                   # (72, 32) rows = (n, h, w)

    # ---- stage 2: im2col as an MXU gather (0/1 selection matmul, exact in
    #      bf16); lane-concat the 9 kernel-offset blocks into a (32, 288)
    #      patch matrix and run conv2 as ONE deep-K (K=288) matmul.
    g = jnp.dot(sel2_ref[...], y1.astype(jnp.bfloat16),
                preferred_element_type=jnp.float32)       # (288, 32)
    p2 = jnp.concatenate([g[k * RB2:(k + 1) * RB2] for k in range(K * K)],
                         axis=1)                          # (32, 288) rows = (dhdw, q, n)
    z2 = jnp.dot(p2.astype(jnp.bfloat16), w2_ref[...],
                 preferred_element_type=jnp.float32)      # (32, 64)
    pooled2 = jnp.maximum(jnp.maximum(z2[0:PB2], z2[PB2:2 * PB2]),
                          jnp.maximum(z2[2 * PB2:3 * PB2], z2[3 * PB2:4 * PB2]))
    y2 = jnp.maximum(pooled2 + b2, 0.0)                   # (8, 64) rows = (q, n)

    # ---- fc1: flatten y2 to (N, 256) with lanes = (q, c) (matching the
    #      pre-permuted fc1 weights) and contract in ONE deep-K (K=256) matmul.
    flat = jnp.concatenate([y2[q * N:(q + 1) * N] for q in range(HP2 * WP2)],
                           axis=1)                        # (2, 256)
    h = jnp.dot(flat.astype(jnp.bfloat16), v1_ref[...],
                preferred_element_type=jnp.float32)
    h = jnp.maximum(h + bfc1, 0.0)                        # (2, 100)

    # ---- fc2; exactly the N real batch rows are stored.
    out_ref[...] = jnp.dot(h.astype(jnp.bfloat16), wfc2_ref[...],
                           preferred_element_type=jnp.float32) + bfc2


def _vmem_spec():
    return pl.BlockSpec(memory_space=pltpu.MemorySpace.VMEM)


# ---------------------------------------------------------------------------
# One-time parameter preparation (hoisted out of the per-call forward)
# ---------------------------------------------------------------------------
def prepare_params(params):
    conv1_w, conv1_b, conv2_w, conv2_b, fc1_w, fc1_b, fc2_w, fc2_b = params

    # Conv weights as (kh, kw, cin) x cout matrices (im2col feature order).
    w1m = jnp.transpose(conv1_w, (2, 3, 1, 0)).reshape(K * K * CIN, C1)
    w2m = jnp.transpose(conv2_w, (2, 3, 1, 0)).reshape(K * K * C1, C2)

    # Stage-2 im2col gather matrix, built around the REAL batch (no padding).
    # Gather-output row (k, dhdw, q, n) picks y1 row (n, 2*ph+dh+kh, 2*pw+dw+kw);
    # y1 rows are ordered (n, h, w).
    sel = np.zeros((K * K * RB2, R1), np.float32)
    for kh in range(K):
        for kw in range(K):
            k = kh * K + kw
            for dh in range(2):
                for dw in range(2):
                    for ph in range(HP2):
                        for pw in range(WP2):
                            q = ph * WP2 + pw
                            for n in range(N):
                                row = k * RB2 + (dh * 2 + dw) * PB2 + q * N + n
                                src = (n * (HP1 * WP1)
                                       + (2 * ph + dh + kh) * WP1
                                       + (2 * pw + dw + kw))
                                sel[row, src] = 1.0

    # fc1 weight permuted to rows (q, c): PyTorch flatten index = c*4 + q,
    # while the kernel's flattened activation lanes are q*C2 + c.
    v1 = np.asarray(fc1_w, np.float32).T.reshape(C2, HP2 * WP2, FC1)
    v1 = np.transpose(v1, (1, 0, 2)).reshape(HP2 * WP2 * C2, FC1)

    # Pack the four bias vectors into one (4, 128) f32 block (single DMA).
    bias = np.zeros((4, 128), np.float32)
    bias[0, :C1] = np.asarray(conv1_b, np.float32)
    bias[1, :C2] = np.asarray(conv2_b, np.float32)
    bias[2, :FC1] = np.asarray(fc1_b, np.float32)
    bias[3, :NCLS] = np.asarray(fc2_b, np.float32)

    return (w1m.astype(jnp.bfloat16),
            jnp.asarray(sel, jnp.bfloat16),        # exact: entries are 0/1
            w2m.astype(jnp.bfloat16),
            jnp.asarray(v1, jnp.bfloat16),
            jnp.asarray(fc2_w, jnp.float32).T.astype(jnp.bfloat16),
            jnp.asarray(bias, jnp.float32))


# ---------------------------------------------------------------------------
# Residual per-call glue: stage-1 im2col of the tiny input (bf16, ~10 KB), with
# the 4 pool offsets stacked along rows so the kernel needs ONE matmul + row-max.
# ---------------------------------------------------------------------------
def _stage1_patches(x_nchw):
    x = jnp.transpose(x_nchw, (0, 2, 3, 1)).astype(jnp.float32)        # NHWC
    n = x.shape[0]
    blocks = []
    for dh in range(2):
        for dw in range(2):
            cols = []
            for kh in range(K):
                for kw in range(K):
                    cols.append(x[:, dh + kh:dh + kh + 2 * HP1:2,
                                     dw + kw:dw + kw + 2 * WP1:2, :])  # (n, 6, 6, 2)
            blocks.append(jnp.concatenate(cols, axis=-1)
                          .reshape(n * HP1 * WP1, K * K * CIN))
    return jnp.concatenate(blocks, axis=0).astype(jnp.bfloat16)  # (288, 18)


# ---------------------------------------------------------------------------
# Forward pass: tiny input glue + ONE pallas_call.
# ---------------------------------------------------------------------------
@jax.jit
def convnet_forward(x_nchw, prepped):
    assert x_nchw.shape == (N, CIN, HIN, WIN)
    p1 = _stage1_patches(x_nchw)
    args = (p1,) + tuple(prepped)

    flops = 2 * (4 * R1 * (K * K * CIN) * C1          # stage-1 matmul
                 + (K * K * RB2) * R1 * C1            # stage-2 gather matmul
                 + RB2 * (K * K * C1) * C2            # conv2 deep-K matmul
                 + N * (HP2 * WP2 * C2) * FC1         # fc1
                 + N * FC1 * NCLS)                    # fc2
    bytes_accessed = (sum(int(np.prod(a.shape)) * a.dtype.itemsize for a in args)
                      + N * NCLS * 4)

    return pl.pallas_call(
        _convnet_kernel,
        out_shape=jax.ShapeDtypeStruct((N, NCLS), jnp.float32),
        in_specs=[_vmem_spec()] * len(args),
        out_specs=_vmem_spec(),
        cost_estimate=pl.CostEstimate(flops=flops, transcendentals=0,
                                      bytes_accessed=bytes_accessed),
    )(*args)


# ---------------------------------------------------------------------------
# Pure-JAX reference (mirrors the PyTorch module exactly) for validation
# ---------------------------------------------------------------------------
def ref_forward(x_nchw, params):
    conv1_w, conv1_b, conv2_w, conv2_b, fc1_w, fc1_b, fc2_w, fc2_b = params
    dn = ('NCHW', 'OIHW', 'NCHW')
    y = lax.conv_general_dilated(x_nchw, conv1_w, (1, 1), 'VALID',
                                 dimension_numbers=dn)
    y = y + conv1_b[None, :, None, None]
    y = lax.reduce_window(y, -jnp.inf, lax.max, (1, 1, 2, 2), (1, 1, 2, 2), 'VALID')
    y = jnp.maximum(y, 0.0)
    y = lax.conv_general_dilated(y, conv2_w, (1, 1), 'VALID',
                                 dimension_numbers=dn)
    y = y + conv2_b[None, :, None, None]
    y = lax.reduce_window(y, -jnp.inf, lax.max, (1, 1, 2, 2), (1, 1, 2, 2), 'VALID')
    y = jnp.maximum(y, 0.0)
    y = y.reshape(y.shape[0], -1)                     # (N, 256), PyTorch flatten order
    y = jnp.maximum(y @ fc1_w.T + fc1_b, 0.0)
    y = y @ fc2_w.T + fc2_b
    return y


# ---------------------------------------------------------------------------
if __name__ == "__main__":
    key = jax.random.PRNGKey(0)
    ks = jax.random.split(key, 9)

    # Input: NCHW, 2 channels, 14x14 spatial (so flatten after conv2/pool == 256).
    x = jax.random.normal(ks[0], (N, CIN, HIN, WIN), jnp.float32)

    # Deterministic synthetic parameters with the PyTorch layer shapes.
    conv1_w = 0.10 * jax.random.normal(ks[1], (C1, CIN, K, K), jnp.float32)
    conv1_b = 0.10 * jax.random.normal(ks[2], (C1,), jnp.float32)
    conv2_w = 0.05 * jax.random.normal(ks[3], (C2, C1, K, K), jnp.float32)
    conv2_b = 0.05 * jax.random.normal(ks[4], (C2,), jnp.float32)
    fc1_w = 0.05 * jax.random.normal(ks[5], (FC1, C2 * HP2 * WP2), jnp.float32)
    fc1_b = 0.05 * jax.random.normal(ks[6], (FC1,), jnp.float32)
    fc2_w = 0.10 * jax.random.normal(ks[7], (NCLS, FC1), jnp.float32)
    fc2_b = 0.10 * jax.random.normal(ks[8], (NCLS,), jnp.float32)
    params = (conv1_w, conv1_b, conv2_w, conv2_b, fc1_w, fc1_b, fc2_w, fc2_b)

    prepped = prepare_params(params)          # one-time weight/layout prep

    out = convnet_forward(x, prepped)
    out = jax.block_until_ready(out)

    ref = ref_forward(x, params)
    # bf16 MXU operands with f32 accumulation: allow ~1e-2 absolute slack.
    np.testing.assert_allclose(np.asarray(out), np.asarray(ref),
                               rtol=2e-2, atol=2e-2)
    print("KERNEL_OK")
</pallas_src>

<mosaic_0001>
module attributes {stable_mosaic.version = 11 : i64} {
  func.func @_convnet_kernel(%arg0: memref<288x18xbf16, #tpu.memory_space<vmem>>, %arg1: memref<18x32xbf16, #tpu.memory_space<vmem>>, %arg2: memref<288x72xbf16, #tpu.memory_space<vmem>>, %arg3: memref<288x64xbf16, #tpu.memory_space<vmem>>, %arg4: memref<256x100xbf16, #tpu.memory_space<vmem>>, %arg5: memref<100x2xbf16, #tpu.memory_space<vmem>>, %arg6: memref<4x128xf32, #tpu.memory_space<vmem>>, %arg7: memref<2x2xf32, #tpu.memory_space<vmem>>) attributes {dimension_semantics = [], scalar_prefetch = 0 : i64, scratch_operands = 0 : i64, tpu.core_type = #tpu.core_type<tc>} {
    %c0 = arith.constant 0 : index
    %c0_0 = arith.constant 0 : index
    %0 = vector.load %arg6[%c0, %c0_0] : memref<4x128xf32, #tpu.memory_space<vmem>>, vector<1x32xf32>
    %c1 = arith.constant 1 : index
    %c0_1 = arith.constant 0 : index
    %1 = vector.load %arg6[%c1, %c0_1] : memref<4x128xf32, #tpu.memory_space<vmem>>, vector<1x64xf32>
    %c2 = arith.constant 2 : index
    %c0_2 = arith.constant 0 : index
    %2 = vector.load %arg6[%c2, %c0_2] : memref<4x128xf32, #tpu.memory_space<vmem>>, vector<1x100xf32>
    %c3 = arith.constant 3 : index
    %c0_3 = arith.constant 0 : index
    %3 = vector.load %arg6[%c3, %c0_3] : memref<4x128xf32, #tpu.memory_space<vmem>>, vector<1x2xf32>
    %c0_4 = arith.constant 0 : index
    %c0_5 = arith.constant 0 : index
    %4 = vector.load %arg0[%c0_4, %c0_5] : memref<288x18xbf16, #tpu.memory_space<vmem>>, vector<288x18xbf16>
    %c0_6 = arith.constant 0 : index
    %c0_7 = arith.constant 0 : index
    %5 = vector.load %arg1[%c0_6, %c0_7] : memref<18x32xbf16, #tpu.memory_space<vmem>>, vector<18x32xbf16>
    %cst = arith.constant dense<0.000000e+00> : vector<288x32xf32>
    %6 = tpu.matmul %4, %5, %cst {dimension_numbers = #tpu.dot_dimension_numbers<[1], [0], [0], [1], [0, 0, 1, 1], [], []>} : vector<288x18xbf16>, vector<18x32xbf16>, vector<288x32xf32> -> vector<288x32xf32>
    %7 = vector.extract_strided_slice %6 {offsets = [0, 0], sizes = [72, 32], strides = [1, 1]} : vector<288x32xf32> to vector<72x32xf32>
    %8 = vector.extract_strided_slice %6 {offsets = [72, 0], sizes = [72, 32], strides = [1, 1]} : vector<288x32xf32> to vector<72x32xf32>
    %9 = arith.maximumf %7, %8 : vector<72x32xf32>
    %10 = vector.extract_strided_slice %6 {offsets = [144, 0], sizes = [72, 32], strides = [1, 1]} : vector<288x32xf32> to vector<72x32xf32>
    %11 = vector.extract_strided_slice %6 {offsets = [216, 0], sizes = [72, 32], strides = [1, 1]} : vector<288x32xf32> to vector<72x32xf32>
    %12 = arith.maximumf %10, %11 : vector<72x32xf32>
    %13 = arith.maximumf %9, %12 : vector<72x32xf32>
    %14 = vector.broadcast %0 : vector<1x32xf32> to vector<72x32xf32>
    %15 = arith.addf %13, %14 : vector<72x32xf32>
    %cst_8 = arith.constant 0.000000e+00 : f32
    %16 = vector.broadcast %cst_8 : f32 to vector<72x32xf32>
    %17 = arith.maximumf %15, %16 : vector<72x32xf32>
    %c0_9 = arith.constant 0 : index
    %c0_10 = arith.constant 0 : index
    %18 = vector.load %arg2[%c0_9, %c0_10] : memref<288x72xbf16, #tpu.memory_space<vmem>>, vector<288x72xbf16>
    %19 = arith.truncf %17 : vector<72x32xf32> to vector<72x32xbf16>
    %cst_11 = arith.constant dense<0.000000e+00> : vector<288x32xf32>
    %20 = tpu.matmul %18, %19, %cst_11 {dimension_numbers = #tpu.dot_dimension_numbers<[1], [0], [0], [1], [0, 0, 1, 1], [], []>} : vector<288x72xbf16>, vector<72x32xbf16>, vector<288x32xf32> -> vector<288x32xf32>
    %21 = vector.extract_strided_slice %20 {offsets = [0, 0], sizes = [32, 32], strides = [1, 1]} : vector<288x32xf32> to vector<32x32xf32>
    %22 = vector.extract_strided_slice %20 {offsets = [32, 0], sizes = [32, 32], strides = [1, 1]} : vector<288x32xf32> to vector<32x32xf32>
    %23 = vector.extract_strided_slice %20 {offsets = [64, 0], sizes = [32, 32], strides = [1, 1]} : vector<288x32xf32> to vector<32x32xf32>
    %24 = vector.extract_strided_slice %20 {offsets = [96, 0], sizes = [32, 32], strides = [1, 1]} : vector<288x32xf32> to vector<32x32xf32>
    %25 = vector.extract_strided_slice %20 {offsets = [128, 0], sizes = [32, 32], strides = [1, 1]} : vector<288x32xf32> to vector<32x32xf32>
    %26 = vector.extract_strided_slice %20 {offsets = [160, 0], sizes = [32, 32], strides = [1, 1]} : vector<288x32xf32> to vector<32x32xf32>
    %27 = vector.extract_strided_slice %20 {offsets = [192, 0], sizes = [32, 32], strides = [1, 1]} : vector<288x32xf32> to vector<32x32xf32>
    %28 = vector.extract_strided_slice %20 {offsets = [224, 0], sizes = [32, 32], strides = [1, 1]} : vector<288x32xf32> to vector<32x32xf32>
    %29 = vector.extract_strided_slice %20 {offsets = [256, 0], sizes = [32, 32], strides = [1, 1]} : vector<288x32xf32> to vector<32x32xf32>
    %30 = tpu.concatenate %21, %22, %23, %24, %25, %26, %27, %28, %29 in 1 : vector<32x32xf32>, vector<32x32xf32>, vector<32x32xf32>, vector<32x32xf32>, vector<32x32xf32>, vector<32x32xf32>, vector<32x32xf32>, vector<32x32xf32>, vector<32x32xf32> -> vector<32x288xf32>
    %31 = arith.truncf %30 : vector<32x288xf32> to vector<32x288xbf16>
    %c0_12 = arith.constant 0 : index
    %c0_13 = arith.constant 0 : index
    %32 = vector.load %arg3[%c0_12, %c0_13] : memref<288x64xbf16, #tpu.memory_space<vmem>>, vector<288x64xbf16>
    %cst_14 = arith.constant dense<0.000000e+00> : vector<32x64xf32>
    %33 = tpu.matmul %31, %32, %cst_14 {dimension_numbers = #tpu.dot_dimension_numbers<[1], [0], [0], [1], [0, 0, 1, 1], [], []>} : vector<32x288xbf16>, vector<288x64xbf16>, vector<32x64xf32> -> vector<32x64xf32>
    %34 = vector.extract_strided_slice %33 {offsets = [0, 0], sizes = [8, 64], strides = [1, 1]} : vector<32x64xf32> to vector<8x64xf32>
    %35 = vector.extract_strided_slice %33 {offsets = [8, 0], sizes = [8, 64], strides = [1, 1]} : vector<32x64xf32> to vector<8x64xf32>
    %36 = arith.maximumf %34, %35 : vector<8x64xf32>
    %37 = vector.extract_strided_slice %33 {offsets = [16, 0], sizes = [8, 64], strides = [1, 1]} : vector<32x64xf32> to vector<8x64xf32>
    %38 = vector.extract_strided_slice %33 {offsets = [24, 0], sizes = [8, 64], strides = [1, 1]} : vector<32x64xf32> to vector<8x64xf32>
    %39 = arith.maximumf %37, %38 : vector<8x64xf32>
    %40 = arith.maximumf %36, %39 : vector<8x64xf32>
    %41 = vector.broadcast %1 : vector<1x64xf32> to vector<8x64xf32>
    %42 = arith.addf %40, %41 : vector<8x64xf32>
    %cst_15 = arith.constant 0.000000e+00 : f32
    %43 = vector.broadcast %cst_15 : f32 to vector<8x64xf32>
    %44 = arith.maximumf %42, %43 : vector<8x64xf32>
    %45 = vector.extract_strided_slice %44 {offsets = [0, 0], sizes = [2, 64], strides = [1, 1]} : vector<8x64xf32> to vector<2x64xf32>
    %46 = vector.extract_strided_slice %44 {offsets = [2, 0], sizes = [2, 64], strides = [1, 1]} : vector<8x64xf32> to vector<2x64xf32>
    %47 = vector.extract_strided_slice %44 {offsets = [4, 0], sizes = [2, 64], strides = [1, 1]} : vector<8x64xf32> to vector<2x64xf32>
    %48 = vector.extract_strided_slice %44 {offsets = [6, 0], sizes = [2, 64], strides = [1, 1]} : vector<8x64xf32> to vector<2x64xf32>
    %49 = tpu.concatenate %45, %46, %47, %48 in 1 : vector<2x64xf32>, vector<2x64xf32>, vector<2x64xf32>, vector<2x64xf32> -> vector<2x256xf32>
    %50 = arith.truncf %49 : vector<2x256xf32> to vector<2x256xbf16>
    %c0_16 = arith.constant 0 : index
    %c0_17 = arith.constant 0 : index
    %51 = vector.load %arg4[%c0_16, %c0_17] : memref<256x100xbf16, #tpu.memory_space<vmem>>, vector<256x100xbf16>
    %cst_18 = arith.constant dense<0.000000e+00> : vector<2x100xf32>
    %52 = tpu.matmul %50, %51, %cst_18 {dimension_numbers = #tpu.dot_dimension_numbers<[1], [0], [0], [1], [0, 0, 1, 1], [], []>} : vector<2x256xbf16>, vector<256x100xbf16>, vector<2x100xf32> -> vector<2x100xf32>
    %53 = vector.broadcast %2 : vector<1x100xf32> to vector<2x100xf32>
    %54 = arith.addf %52, %53 : vector<2x100xf32>
    %cst_19 = arith.constant 0.000000e+00 : f32
    %55 = vector.broadcast %cst_19 : f32 to vector<2x100xf32>
    %56 = arith.maximumf %54, %55 : vector<2x100xf32>
    %57 = arith.truncf %56 : vector<2x100xf32> to vector<2x100xbf16>
    %c0_20 = arith.constant 0 : index
    %c0_21 = arith.constant 0 : index
    %58 = vector.load %arg5[%c0_20, %c0_21] : memref<100x2xbf16, #tpu.memory_space<vmem>>, vector<100x2xbf16>
    %cst_22 = arith.constant dense<0.000000e+00> : vector<2x2xf32>
    %59 = tpu.matmul %57, %58, %cst_22 {dimension_numbers = #tpu.dot_dimension_numbers<[1], [0], [0], [1], [0, 0, 1, 1], [], []>} : vector<2x100xbf16>, vector<100x2xbf16>, vector<2x2xf32> -> vector<2x2xf32>
    %60 = vector.broadcast %3 : vector<1x2xf32> to vector<2x2xf32>
    %61 = arith.addf %59, %60 : vector<2x2xf32>
    %c0_23 = arith.constant 0 : index
    %c0_24 = arith.constant 0 : index
    %62 = vector.load %arg7[%c0_23, %c0_24] : memref<2x2xf32, #tpu.memory_space<vmem>>, vector<2x2xf32>
    tpu.vector_store %arg7[%c0_23, %c0_24], %61 {strides = array<i32>} : memref<2x2xf32, #tpu.memory_space<vmem>>, vector<2x2xf32>,
    return
  }
}

</mosaic_0001>

<llo_original>
// kernel: convnet_forward.1
$region0: #{convnet_forward.1}
  #allocation0 [shape = 'u32[]', space=smem, size = 0x4, offset = 0x4, fixed_abs, tag = 'smem constant byte address 0x4 - core index']
  #allocation1 [shape = 'u32[144,128]{1,0:T(1,128)}', space=vmem, size = 0x12000, scoped, tag = 'internal scratch']
  %s0 = inlined_call_operand.vmem [shape: bf16[288,18], index: 0, kind: input, shape index: {}]
  %s1 = inlined_call_operand.vmem [shape: bf16[18,32], index: 1, kind: input, shape index: {}]
  %s2 = inlined_call_operand.vmem [shape: bf16[288,72], index: 2, kind: input, shape index: {}]
  %s3 = inlined_call_operand.vmem [shape: bf16[288,64], index: 3, kind: input, shape index: {}]
  %s4 = inlined_call_operand.vmem [shape: bf16[256,100], index: 4, kind: input, shape index: {}]
  %s5 = inlined_call_operand.vmem [shape: bf16[100,2], index: 5, kind: input, shape index: {}]
  %s6 = inlined_call_operand.vmem [shape: f32[4,128], index: 6, kind: input, shape index: {}]
  %s7 = inlined_call_operand.hbm [shape: f32[2,2], index: 7, kind: output, shape index: {}]
  %s8 = sld [smem:[#allocation0]]
  $region38: #{convnet_forward.1} parent=0
    _
  %s10 = ssub.s32 1, %s8
  %s11 = scalar_select 0, %s10, %s8
  $region1: #{convnet_forward.1} parent=0
    #allocation2 [shape = 'u8[1024]{0}', space=vmem, size = 0x400, scoped, tag = 'output window, operand 0, single buffered']
    #allocation3 [shape = 's32[1]{0}', space=sflag, size = 0x4, scoped, tag = 'scoped memory for convnet_forward.1']
    %12 = vsyncpa [#allocation3], 0
    // Predicated region
    $region2: #{convnet_forward.1} parent=1 // pred_check
      _
    $region3: #{convnet_forward.1} parent=1 // pred_check_branch
      %14 = sbr.rel (0) target = $region5
    $region4: #{convnet_forward.1} parent=1 // pred_region
      _
    $region5: #{convnet_forward.1} parent=1 // pred_fallthru
      _
    // Predicated region
    $region6: #{convnet_forward.1} parent=1 // pred_check
      _
    $region7: #{convnet_forward.1} parent=1 // pred_check_branch
      %16 = sbr.rel (0) target = $region9
    $region8: #{convnet_forward.1} parent=1 // pred_region
      _
    $region9: #{convnet_forward.1} parent=1 // pred_fallthru
      _
    // Predicated region
    $region10: #{convnet_forward.1} parent=1 // pred_check
      _
    $region11: #{convnet_forward.1} parent=1 // pred_check_branch
      %18 = sbr.rel (0) target = $region13
    $region12: #{convnet_forward.1} parent=1 // pred_region
      _
    $region13: #{convnet_forward.1} parent=1 // pred_fallthru
      _
    // Predicated region
    $region14: #{convnet_forward.1} parent=1 // pred_check
      _
    $region15: #{convnet_forward.1} parent=1 // pred_check_branch
      %20 = sbr.rel (0) target = $region17
    $region16: #{convnet_forward.1} parent=1 // pred_region
      _
    $region17: #{convnet_forward.1} parent=1 // pred_fallthru
      _
    // Predicated region
    $region18: #{convnet_forward.1} parent=1 // pred_check
      _
    $region19: #{convnet_forward.1} parent=1 // pred_check_branch
      %22 = sbr.rel (0) target = $region21
    $region20: #{convnet_forward.1} parent=1 // pred_region
      _
    $region21: #{convnet_forward.1} parent=1 // pred_fallthru
      _
    // Predicated region
    $region22: #{convnet_forward.1} parent=1 // pred_check
      _
    $region23: #{convnet_forward.1} parent=1 // pred_check_branch
      %24 = sbr.rel (0) target = $region25
    $region24: #{convnet_forward.1} parent=1 // pred_region
      _
    $region25: #{convnet_forward.1} parent=1 // pred_fallthru
      _
    // Predicated region
    $region26: #{convnet_forward.1} parent=1 // pred_check
      _
    $region27: #{convnet_forward.1} parent=1 // pred_check_branch
      %26 = sbr.rel (0) target = $region29
    $region28: #{convnet_forward.1} parent=1 // pred_region
      _
    $region29: #{convnet_forward.1} parent=1 // pred_fallthru
      _
    %v28 = vld [vmem:[%s6] sm:$0x1]
    %v29 = vld [vmem:[%s6 + $0x1] sm:$0x1]
    %v30 = vld [vmem:[%s6 + $0x2] sm:$0x1]
    %v31 = vld [vmem:[%s6 + $0x3] sm:$0x1]
    %v32 = vld [vmem:[%s0] sm:$0xf]
    %v33 = vld [vmem:[%s0 + $0x4] sm:$0xf]
    %v34 = vld [vmem:[%s0 + $0x8] sm:$0xf]
    %v35 = vld [vmem:[%s0 + $0xc] sm:$0xf]
    %v36 = vld [vmem:[%s0 + $0x10] sm:$0xf]
    %v37 = vld [vmem:[%s0 + $0x14] sm:$0xf]
    %v38 = vld [vmem:[%s0 + $0x18] sm:$0xf]
    %v39 = vld [vmem:[%s0 + $0x1c] sm:$0xf]
    %v40 = vld [vmem:[%s0 + $0x20] sm:$0xf]
    %v41 = vld [vmem:[%s0 + $0x24] sm:$0xf]
    %v42 = vld [vmem:[%s0 + $0x28] sm:$0xf]
    %v43 = vld [vmem:[%s0 + $0x2c] sm:$0xf]
    %v44 = vld [vmem:[%s0 + $0x30] sm:$0xf]
    %v45 = vld [vmem:[%s0 + $0x34] sm:$0xf]
    %v46 = vld [vmem:[%s0 + $0x38] sm:$0xf]
    %v47 = vld [vmem:[%s0 + $0x3c] sm:$0xf]
    %v48 = vld [vmem:[%s0 + $0x40] sm:$0xf]
    %v49 = vld [vmem:[%s0 + $0x44] sm:$0xf]
    %v50 = vld [vmem:[%s0 + $0x48] sm:$0xf]
    %v51 = vld [vmem:[%s0 + $0x4c] sm:$0xf]
    %v52 = vld [vmem:[%s0 + $0x50] sm:$0xf]
    %v53 = vld [vmem:[%s0 + $0x54] sm:$0xf]
    %v54 = vld [vmem:[%s0 + $0x58] sm:$0xf]
    %v55 = vld [vmem:[%s0 + $0x5c] sm:$0xf]
    %v56 = vld [vmem:[%s0 + $0x60] sm:$0xf]
    %v57 = vld [vmem:[%s0 + $0x64] sm:$0xf]
    %v58 = vld [vmem:[%s0 + $0x68] sm:$0xf]
    %v59 = vld [vmem:[%s0 + $0x6c] sm:$0xf]
    %v60 = vld [vmem:[%s0 + $0x70] sm:$0xf]
    %v61 = vld [vmem:[%s0 + $0x74] sm:$0xf]
    %v62 = vld [vmem:[%s0 + $0x78] sm:$0xf]
    %v63 = vld [vmem:[%s0 + $0x7c] sm:$0xf]
    %v64 = vld [vmem:[%s0 + $0x80] sm:$0xf]
    %v65 = vld [vmem:[%s0 + $0x84] sm:$0xf]
    %v66 = vld [vmem:[%s0 + $0x88] sm:$0xf]
    %v67 = vld [vmem:[%s0 + $0x8c] sm:$0xf]
    %v68 = vld [vmem:[%s1] sm:$0xf]
    %v69 = vld [vmem:[%s1 + $0x4] sm:$0xf]
    %v70 = vld [vmem:[%s1 + $0x8] sm:$0x1]
    %v107 = vunpack.c.l.b16 %v32
    %v108 = vunpack.c.l.b16 %v33
    %v109 = vunpack.c.l.b16 %v34
    %v110 = vunpack.c.l.b16 %v35
    %v111 = vunpack.c.l.b16 %v36
    %v112 = vunpack.c.l.b16 %v37
    %v113 = vunpack.c.l.b16 %v38
    %v114 = vunpack.c.l.b16 %v39
    %v115 = vunpack.c.l.b16 %v40
    %v116 = vunpack.c.l.b16 %v41
    %v117 = vunpack.c.l.b16 %v42
    %v118 = vunpack.c.l.b16 %v43
    %v119 = vunpack.c.l.b16 %v44
    %v120 = vunpack.c.l.b16 %v45
    %v121 = vunpack.c.l.b16 %v46
    %v122 = vunpack.c.l.b16 %v47
    %v123 = vunpack.c.l.b16 %v48
    %v124 = vunpack.c.l.b16 %v49
    %v125 = vunpack.c.l.b16 %v50
    %v126 = vunpack.c.l.b16 %v51
    %v127 = vunpack.c.l.b16 %v52
    %v128 = vunpack.c.l.b16 %v53
    %v129 = vunpack.c.l.b16 %v54
    %v130 = vunpack.c.l.b16 %v55
    %v131 = vunpack.c.l.b16 %v56
    %v132 = vunpack.c.l.b16 %v57
    %v133 = vunpack.c.l.b16 %v58
    %v134 = vunpack.c.l.b16 %v59
    %v135 = vunpack.c.l.b16 %v60
    %v136 = vunpack.c.l.b16 %v61
    %v137 = vunpack.c.l.b16 %v62
    %v138 = vunpack.c.l.b16 %v63
    %v139 = vunpack.c.l.b16 %v64
    %v140 = vunpack.c.l.b16 %v65
    %v141 = vunpack.c.l.b16 %v66
    %v142 = vunpack.c.l.b16 %v67
    %v143 = vpack.c.b16 %v108, %v107
    %v144 = vpack.c.b16 %v110, %v109
    %v145 = vpack.c.b16 %v112, %v111
    %v146 = vpack.c.b16 %v114, %v113
    %v147 = vpack.c.b16 %v116, %v115
    %v148 = vpack.c.b16 %v118, %v117
    %v149 = vpack.c.b16 %v120, %v119
    %v150 = vpack.c.b16 %v122, %v121
    %v151 = vpack.c.b16 %v124, %v123
    %v152 = vpack.c.b16 %v126, %v125
    %v153 = vpack.c.b16 %v128, %v127
    %v154 = vpack.c.b16 %v130, %v129
    %v155 = vpack.c.b16 %v132, %v131
    %v156 = vpack.c.b16 %v134, %v133
    %v157 = vpack.c.b16 %v136, %v135
    %v158 = vpack.c.b16 %v138, %v137
    %v159 = vpack.c.b16 %v140, %v139
    %v160 = vpack.c.b16 %v142, %v141
    %v164 = vunpack.c.l.b16 %v68
    %v165 = vunpack.c.l.b16 %v69
    %v166 = vunpack.c.l.b16 %v70
    %v167 = vpack.c.b16 %v165, %v164
    %v168 = vpack.c.b16 %v166, %v166
    %vm170 = vcmask 146432
    %v172 = vsel %vm170, %v143, 0
    %v175 = vsel %vm170, %v144, 0
    %v178 = vsel %vm170, %v145, 0
    %v181 = vsel %vm170, %v146, 0
    %v184 = vsel %vm170, %v147, 0
    %v187 = vsel %vm170, %v148, 0
    %v190 = vsel %vm170, %v149, 0
    %v193 = vsel %vm170, %v150, 0
    %v196 = vsel %vm170, %v151, 0
    %v199 = vsel %vm170, %v152, 0
    %v202 = vsel %vm170, %v153, 0
    %v205 = vsel %vm170, %v154, 0
    %v208 = vsel %vm170, %v155, 0
    %v211 = vsel %vm170, %v156, 0
    %v214 = vsel %vm170, %v157, 0
    %v217 = vsel %vm170, %v158, 0
    %v220 = vsel %vm170, %v159, 0
    %v223 = vsel %vm170, %v160, 0
    %vm225 = vcmask 1040384
    %v227 = vsel %vm225, %v168, 0
    %229 = vmatprep.subr.bf16.mxu0 0
    %230 = vmatpush1.bf16.msra.mxu0 0
    %231 = vmatprep.subr.bf16.mxu0 0
    %232 = vmatpush1.bf16.msra.mxu0 0
    %233 = vmatprep.subr.bf16.mxu0 0
    %234 = vmatpush1.bf16.msra.mxu0 0
    %235 = vmatprep.subr.bf16.mxu0 0
    %236 = vmatpush1.bf16.msra.mxu0 0
    %237 = vmatprep.subr.bf16.mxu0 0
    %238 = vmatpush1.bf16.msra.mxu0 0
    %239 = vmatprep.subr.bf16.mxu0 0
    %240 = vmatpush1.bf16.msra.mxu0 0
    %241 = vmatprep.subr.bf16.mxu0 0
    %242 = vmatpush1.bf16.msra.mxu0 %v227
    %243 = vmatprep.subr.bf16.mxu0 0
    %244 = vmatpush1.bf16.msra.mxu0 %v167
    %245 = vmatprep.subr.bf16.mxu0 0
    %246 = vmatpush2.bf16.msra.mxu0 0
    %247 = vmatprep.subr.bf16.mxu0 0
    %248 = vmatpush2.bf16.msra.mxu0 0
    %249 = vmatprep.subr.bf16.mxu0 0
    %250 = vmatpush2.bf16.msra.mxu0 0
    %251 = vmatprep.subr.bf16.mxu0 0
    %252 = vmatpush2.bf16.msra.mxu0 0
    %253 = vmatprep.subr.bf16.mxu0 0
    %254 = vmatpush2.bf16.msra.mxu0 0
    %255 = vmatprep.subr.bf16.mxu0 0
    %256 = vmatpush2.bf16.msra.mxu0 0
    %257 = vmatprep.subr.bf16.mxu0 0
    %258 = vmatpush2.bf16.msra.mxu0 0
    %259 = vmatprep.subr.bf16.mxu0 0
    %260 = vmatpush2.bf16.msra.mxu0 0
    %261 = vmatprep.mubr.bf16.mxu0 0
    %262 = vmatmul.mubr.bf16.gmra.mxu0 %v172
    %v263 = vpop.f32.mrf.mxu0
    %v264 = vadd.f32 0.0, %v263
    %v265 = vpop.f32.mrf.mxu0
    %v266 = vpop.f32.mrf.mxu0
    %v267 = vadd.f32 0.0, %v266
    %v268 = vpop.f32.mrf.mxu0
    %269 = vmatprep.mubr.bf16.mxu0 0
    %270 = vmatmul.mubr.bf16.gmra.mxu0 %v175
    %v271 = vpop.f32.mrf.mxu0
    %v272 = vadd.f32 0.0, %v271
    %v273 = vpop.f32.mrf.mxu0
    %v274 = vpop.f32.mrf.mxu0
    %v275 = vadd.f32 0.0, %v274
    %v276 = vpop.f32.mrf.mxu0
    %277 = vmatprep.mubr.bf16.mxu0 0
    %278 = vmatmul.mubr.bf16.gmra.mxu0 %v178
    %v279 = vpop.f32.mrf.mxu0
    %v280 = vadd.f32 0.0, %v279
    %v281 = vpop.f32.mrf.mxu0
    %v282 = vpop.f32.mrf.mxu0
    %v283 = vadd.f32 0.0, %v282
    %v284 = vpop.f32.mrf.mxu0
    %285 = vmatprep.mubr.bf16.mxu0 0
    %286 = vmatmul.mubr.bf16.gmra.mxu0 %v181
    %v287 = vpop.f32.mrf.mxu0
    %v288 = vadd.f32 0.0, %v287
    %v289 = vpop.f32.mrf.mxu0
    %v290 = vpop.f32.mrf.mxu0
    %v291 = vadd.f32 0.0, %v290
    %v292 = vpop.f32.mrf.mxu0
    %293 = vmatprep.mubr.bf16.mxu0 0
    %294 = vmatmul.mubr.bf16.gmra.mxu0 %v184
    %v295 = vpop.f32.mrf.mxu0
    %v296 = vadd.f32 0.0, %v295
    %v297 = vpop.f32.mrf.mxu0
    %v298 = vpop.f32.mrf.mxu0
    %v299 = vadd.f32 0.0, %v298
    %v300 = vpop.f32.mrf.mxu0
    %301 = vmatprep.mubr.bf16.mxu0 0
    %302 = vmatmul.mubr.bf16.gmra.mxu0 %v187
    %v303 = vpop.f32.mrf.mxu0
    %v304 = vadd.f32 0.0, %v303
    %v305 = vpop.f32.mrf.mxu0
    %v306 = vpop.f32.mrf.mxu0
    %v307 = vadd.f32 0.0, %v306
    %v308 = vpop.f32.mrf.mxu0
    %309 = vmatprep.mubr.bf16.mxu0 0
    %310 = vmatmul.mubr.bf16.gmra.mxu0 %v190
    %v311 = vpop.f32.mrf.mxu0
    %v312 = vadd.f32 0.0, %v311
    %v313 = vpop.f32.mrf.mxu0
    %v314 = vpop.f32.mrf.mxu0
    %v315 = vadd.f32 0.0, %v314
    %v316 = vpop.f32.mrf.mxu0
    %317 = vmatprep.mubr.bf16.mxu0 0
    %318 = vmatmul.mubr.bf16.gmra.mxu0 %v193
    %v319 = vpop.f32.mrf.mxu0
    %v320 = vadd.f32 0.0, %v319
    %v321 = vpop.f32.mrf.mxu0
    %v322 = vpop.f32.mrf.mxu0
    %v323 = vadd.f32 0.0, %v322
    %v324 = vpop.f32.mrf.mxu0
    %325 = vmatprep.mubr.bf16.mxu0 0
    %326 = vmatmul.mubr.bf16.gmra.mxu0 %v196
    %v327 = vpop.f32.mrf.mxu0
    %v328 = vadd.f32 0.0, %v327
    %v329 = vpop.f32.mrf.mxu0
    %v330 = vpop.f32.mrf.mxu0
    %v331 = vadd.f32 0.0, %v330
    %v332 = vpop.f32.mrf.mxu0
    %333 = vmatprep.mubr.bf16.mxu0 0
    %334 = vmatmul.mubr.bf16.gmra.mxu0 %v199
    %v335 = vpop.f32.mrf.mxu0
    %v336 = vadd.f32 0.0, %v335
    %v337 = vpop.f32.mrf.mxu0
    %v338 = vpop.f32.mrf.mxu0
    %v339 = vadd.f32 0.0, %v338
    %v340 = vpop.f32.mrf.mxu0
    %341 = vmatprep.mubr.bf16.mxu0 0
    %342 = vmatmul.mubr.bf16.gmra.mxu0 %v202
    %v343 = vpop.f32.mrf.mxu0
    %v344 = vadd.f32 0.0, %v343
    %v345 = vpop.f32.mrf.mxu0
    %v346 = vpop.f32.mrf.mxu0
    %v347 = vadd.f32 0.0, %v346
    %v348 = vpop.f32.mrf.mxu0
    %349 = vmatprep.mubr.bf16.mxu0 0
    %350 = vmatmul.mubr.bf16.gmra.mxu0 %v205
    %v351 = vpop.f32.mrf.mxu0
    %v352 = vadd.f32 0.0, %v351
    %v353 = vpop.f32.mrf.mxu0
    %v354 = vpop.f32.mrf.mxu0
    %v355 = vadd.f32 0.0, %v354
    %v356 = vpop.f32.mrf.mxu0
    %357 = vmatprep.mubr.bf16.mxu0 0
    %358 = vmatmul.mubr.bf16.gmra.mxu0 %v208
    %v359 = vpop.f32.mrf.mxu0
    %v360 = vadd.f32 0.0, %v359
    %v361 = vpop.f32.mrf.mxu0
    %v362 = vpop.f32.mrf.mxu0
    %v363 = vadd.f32 0.0, %v362
    %v364 = vpop.f32.mrf.mxu0
    %365 = vmatprep.mubr.bf16.mxu0 0
    %366 = vmatmul.mubr.bf16.gmra.mxu0 %v211
    %v367 = vpop.f32.mrf.mxu0
    %v368 = vadd.f32 0.0, %v367
    %v369 = vpop.f32.mrf.mxu0
    %v370 = vpop.f32.mrf.mxu0
    %v371 = vadd.f32 0.0, %v370
    %v372 = vpop.f32.mrf.mxu0
    %373 = vmatprep.mubr.bf16.mxu0 0
    %374 = vmatmul.mubr.bf16.gmra.mxu0 %v214
    %v375 = vpop.f32.mrf.mxu0
    %v376 = vadd.f32 0.0, %v375
    %v377 = vpop.f32.mrf.mxu0
    %v378 = vpop.f32.mrf.mxu0
    %v379 = vadd.f32 0.0, %v378
    %v380 = vpop.f32.mrf.mxu0
    %381 = vmatprep.mubr.bf16.mxu0 0
    %382 = vmatmul.mubr.bf16.gmra.mxu0 %v217
    %v383 = vpop.f32.mrf.mxu0
    %v384 = vadd.f32 0.0, %v383
    %v385 = vpop.f32.mrf.mxu0
    %v386 = vpop.f32.mrf.mxu0
    %v387 = vadd.f32 0.0, %v386
    %v388 = vpop.f32.mrf.mxu0
    %389 = vmatprep.mubr.bf16.mxu0 0
    %390 = vmatmul.mubr.bf16.gmra.mxu0 %v220
    %v391 = vpop.f32.mrf.mxu0
    %v392 = vadd.f32 0.0, %v391
    %v393 = vpop.f32.mrf.mxu0
    %v394 = vpop.f32.mrf.mxu0
    %v395 = vadd.f32 0.0, %v394
    %v396 = vpop.f32.mrf.mxu0
    %397 = vmatprep.mubr.bf16.mxu0 0
    %398 = vmatmul.mubr.bf16.gmra.mxu0 %v223
    %v399 = vpop.f32.mrf.mxu0
    %v400 = vadd.f32 0.0, %v399
    %v401 = vpop.f32.mrf.mxu0
    %v402 = vpop.f32.mrf.mxu0
    %v403 = vadd.f32 0.0, %v402
    %v404 = vpop.f32.mrf.mxu0
    %405 = vdwg.mxu0
    %v406 = vmax.f32 %v264, %v299
    %v407 = vmax.f32 %v267, %v304
    %v408 = vmax.f32 %v272, %v307
    %v409 = vmax.f32 %v275, %v312
    %v410 = vmax.f32 %v280, %v315
    %v411 = vmax.f32 %v283, %v320
    %v412 = vmax.f32 %v288, %v323
    %v413 = vmax.f32 %v291, %v328
    %v414 = vmax.f32 %v296, %v331
    %v415 = vmax.f32 %v336, %v371
    %v416 = vmax.f32 %v339, %v376
    %v417 = vmax.f32 %v344, %v379
    %v418 = vmax.f32 %v347, %v384
    %v419 = vmax.f32 %v352, %v387
    %v420 = vmax.f32 %v355, %v392
    %v421 = vmax.f32 %v360, %v395
    %v422 = vmax.f32 %v363, %v400
    %v423 = vmax.f32 %v368, %v403
    %v424 = vmax.f32 %v406, %v415
    %v425 = vmax.f32 %v407, %v416
    %v426 = vmax.f32 %v408, %v417
    %v427 = vmax.f32 %v409, %v418
    %v428 = vmax.f32 %v410, %v419
    %v429 = vmax.f32 %v411, %v420
    %v430 = vmax.f32 %v412, %v421
    %v431 = vmax.f32 %v413, %v422
    %v432 = vmax.f32 %v414, %v423
    %v433 = vlaneseq
    %v434 = vshrl.u32 %v433, 7
    %v435 = vsub.s32 0, %v434
    %v436 = vrot.slane %v28, %v435
    %v437 = vadd.f32 %v424, %v436
    %v438 = vadd.f32 %v425, %v436
    %v439 = vadd.f32 %v426, %v436
    %v440 = vadd.f32 %v427, %v436
    %v441 = vadd.f32 %v428, %v436
    %v442 = vadd.f32 %v429, %v436
    %v443 = vadd.f32 %v430, %v436
    %v444 = vadd.f32 %v431, %v436
    %v445 = vadd.f32 %v432, %v436
    %v446 = vmax.f32 %v437, 0.0
    %v447 = vmax.f32 %v438, 0.0
    %v448 = vmax.f32 %v439, 0.0
    %v449 = vmax.f32 %v440, 0.0
    %v450 = vmax.f32 %v441, 0.0
    %v451 = vmax.f32 %v442, 0.0
    %v452 = vmax.f32 %v443, 0.0
    %v453 = vmax.f32 %v444, 0.0
    %v454 = vmax.f32 %v445, 0.0
    %v455 = vld [vmem:[%s2] sm:$0xf]
    %v456 = vld [vmem:[%s2 + $0x4] sm:$0xf]
    %v457 = vld [vmem:[%s2 + $0x8] sm:$0xf]
    %v458 = vld [vmem:[%s2 + $0xc] sm:$0xf]
    %v459 = vld [vmem:[%s2 + $0x10] sm:$0xf]
    %v460 = vld [vmem:[%s2 + $0x14] sm:$0xf]
    %v461 = vld [vmem:[%s2 + $0x18] sm:$0xf]
    %v462 = vld [vmem:[%s2 + $0x1c] sm:$0xf]
    %v463 = vld [vmem:[%s2 + $0x20] sm:$0xf]
    %v464 = vld [vmem:[%s2 + $0x24] sm:$0xf]
    %v465 = vld [vmem:[%s2 + $0x28] sm:$0xf]
    %v466 = vld [vmem:[%s2 + $0x2c] sm:$0xf]
    %v467 = vld [vmem:[%s2 + $0x30] sm:$0xf]
    %v468 = vld [vmem:[%s2 + $0x34] sm:$0xf]
    %v469 = vld [vmem:[%s2 + $0x38] sm:$0xf]
    %v470 = vld [vmem:[%s2 + $0x3c] sm:$0xf]
    %v471 = vld [vmem:[%s2 + $0x40] sm:$0xf]
    %v472 = vld [vmem:[%s2 + $0x44] sm:$0xf]
    %v473 = vld [vmem:[%s2 + $0x48] sm:$0xf]
    %v474 = vld [vmem:[%s2 + $0x4c] sm:$0xf]
    %v475 = vld [vmem:[%s2 + $0x50] sm:$0xf]
    %v476 = vld [vmem:[%s2 + $0x54] sm:$0xf]
    %v477 = vld [vmem:[%s2 + $0x58] sm:$0xf]
    %v478 = vld [vmem:[%s2 + $0x5c] sm:$0xf]
    %v479 = vld [vmem:[%s2 + $0x60] sm:$0xf]
    %v480 = vld [vmem:[%s2 + $0x64] sm:$0xf]
    %v481 = vld [vmem:[%s2 + $0x68] sm:$0xf]
    %v482 = vld [vmem:[%s2 + $0x6c] sm:$0xf]
    %v483 = vld [vmem:[%s2 + $0x70] sm:$0xf]
    %v484 = vld [vmem:[%s2 + $0x74] sm:$0xf]
    %v485 = vld [vmem:[%s2 + $0x78] sm:$0xf]
    %v486 = vld [vmem:[%s2 + $0x7c] sm:$0xf]
    %v487 = vld [vmem:[%s2 + $0x80] sm:$0xf]
    %v488 = vld [vmem:[%s2 + $0x84] sm:$0xf]
    %v489 = vld [vmem:[%s2 + $0x88] sm:$0xf]
    %v490 = vld [vmem:[%s2 + $0x8c] sm:$0xf]
    %v491 = vpack.c.bf16 %v447, %v446
    %v492 = vpack.c.bf16 %v449, %v448
    %v493 = vpack.c.bf16 %v451, %v450
    %v494 = vpack.c.bf16 %v453, %v452
    %v495 = vpack.c.bf16 %v454, %v454
    %v532 = vunpack.c.l.b16 %v455
    %v533 = vunpack.c.l.b16 %v456
    %v534 = vunpack.c.l.b16 %v457
    %v535 = vunpack.c.l.b16 %v458
    %v536 = vunpack.c.l.b16 %v459
    %v537 = vunpack.c.l.b16 %v460
    %v538 = vunpack.c.l.b16 %v461
    %v539 = vunpack.c.l.b16 %v462
    %v540 = vunpack.c.l.b16 %v463
    %v541 = vunpack.c.l.b16 %v464
    %v542 = vunpack.c.l.b16 %v465
    %v543 = vunpack.c.l.b16 %v466
    %v544 = vunpack.c.l.b16 %v467
    %v545 = vunpack.c.l.b16 %v468
    %v546 = vunpack.c.l.b16 %v469
    %v547 = vunpack.c.l.b16 %v470
    %v548 = vunpack.c.l.b16 %v471
    %v549 = vunpack.c.l.b16 %v472
    %v550 = vunpack.c.l.b16 %v473
    %v551 = vunpack.c.l.b16 %v474
    %v552 = vunpack.c.l.b16 %v475
    %v553 = vunpack.c.l.b16 %v476
    %v554 = vunpack.c.l.b16 %v477
    %v555 = vunpack.c.l.b16 %v478
    %v556 = vunpack.c.l.b16 %v479
    %v557 = vunpack.c.l.b16 %v480
    %v558 = vunpack.c.l.b16 %v481
    %v559 = vunpack.c.l.b16 %v482
    %v560 = vunpack.c.l.b16 %v483
    %v561 = vunpack.c.l.b16 %v484
    %v562 = vunpack.c.l.b16 %v485
    %v563 = vunpack.c.l.b16 %v486
    %v564 = vunpack.c.l.b16 %v487
    %v565 = vunpack.c.l.b16 %v488
    %v566 = vunpack.c.l.b16 %v489
    %v567 = vunpack.c.l.b16 %v490
    %v568 = vpack.c.b16 %v533, %v532
    %v569 = vpack.c.b16 %v535, %v534
    %v570 = vpack.c.b16 %v537, %v536
    %v571 = vpack.c.b16 %v539, %v538
    %v572 = vpack.c.b16 %v541, %v540
    %v573 = vpack.c.b16 %v543, %v542
    %v574 = vpack.c.b16 %v545, %v544
    %v575 = vpack.c.b16 %v547, %v546
    %v576 = vpack.c.b16 %v549, %v548
    %v577 = vpack.c.b16 %v551, %v550
    %v578 = vpack.c.b16 %v553, %v552
    %v579 = vpack.c.b16 %v555, %v554
    %v580 = vpack.c.b16 %v557, %v556
    %v581 = vpack.c.b16 %v559, %v558
    %v582 = vpack.c.b16 %v561, %v560
    %v583 = vpack.c.b16 %v563, %v562
    %v584 = vpack.c.b16 %v565, %v564
    %v585 = vpack.c.b16 %v567, %v566
    %vm586 = vcmask 588800
    %v588 = vsel %vm586, %v568, 0
    %v591 = vsel %vm586, %v569, 0
    %v594 = vsel %vm586, %v570, 0
    %v597 = vsel %vm586, %v571, 0
    %v600 = vsel %vm586, %v572, 0
    %v603 = vsel %vm586, %v573, 0
    %v606 = vsel %vm586, %v574, 0
    %v609 = vsel %vm586, %v575, 0
    %v612 = vsel %vm586, %v576, 0
    %v615 = vsel %vm586, %v577, 0
    %v618 = vsel %vm586, %v578, 0
    %v621 = vsel %vm586, %v579, 0
    %v624 = vsel %vm586, %v580, 0
    %v627 = vsel %vm586, %v581, 0
    %v630 = vsel %vm586, %v582, 0
    %v633 = vsel %vm586, %v583, 0
    %v636 = vsel %vm586, %v584, 0
    %v639 = vsel %vm586, %v585, 0
    %vm641 = vcmask 1043456
    %v643 = vsel %vm641, %v495, 0
    %645 = vmatprep.subr.bf16.mxu0 0
    %646 = vmatpush1.bf16.msra.mxu0 0
    %647 = vmatprep.subr.bf16.mxu0 0
    %648 = vmatpush1.bf16.msra.mxu0 0
    %649 = vmatprep.subr.bf16.mxu0 0
    %650 = vmatpush1.bf16.msra.mxu0 0
    %651 = vmatprep.subr.bf16.mxu0 0
    %652 = vmatpush1.bf16.msra.mxu0 %v643
    %653 = vmatprep.subr.bf16.mxu0 0
    %654 = vmatpush1.bf16.msra.mxu0 %v494
    %655 = vmatprep.subr.bf16.mxu0 0
    %656 = vmatpush1.bf16.msra.mxu0 %v493
    %657 = vmatprep.subr.bf16.mxu0 0
    %658 = vmatpush1.bf16.msra.mxu0 %v492
    %659 = vmatprep.subr.bf16.mxu0 0
    %660 = vmatpush1.bf16.msra.mxu0 %v491
    %661 = vmatprep.subr.bf16.mxu0 0
    %662 = vmatpush2.bf16.msra.mxu0 0
    %663 = vmatprep.subr.bf16.mxu0 0
    %664 = vmatpush2.bf16.msra.mxu0 0
    %665 = vmatprep.subr.bf16.mxu0 0
    %666 = vmatpush2.bf16.msra.mxu0 0
    %667 = vmatprep.subr.bf16.mxu0 0
    %668 = vmatpush2.bf16.msra.mxu0 0
    %669 = vmatprep.subr.bf16.mxu0 0
    %670 = vmatpush2.bf16.msra.mxu0 0
    %671 = vmatprep.subr.bf16.mxu0 0
    %672 = vmatpush2.bf16.msra.mxu0 0
    %673 = vmatprep.subr.bf16.mxu0 0
    %674 = vmatpush2.bf16.msra.mxu0 0
    %675 = vmatprep.subr.bf16.mxu0 0
    %676 = vmatpush2.bf16.msra.mxu0 0
    %677 = vmatprep.mubr.bf16.mxu0 0
    %678 = vmatmul.mubr.bf16.gmra.mxu0 %v588
    %v679 = vpop.f32.mrf.mxu0
    %v680 = vadd.f32 0.0, %v679
    %v681 = vpop.f32.mrf.mxu0
    %v682 = vpop.f32.mrf.mxu0
    %v683 = vadd.f32 0.0, %v682
    %v684 = vpop.f32.mrf.mxu0
    %685 = vmatprep.mubr.bf16.mxu0 0
    %686 = vmatmul.mubr.bf16.gmra.mxu0 %v591
    %v687 = vpop.f32.mrf.mxu0
    %v688 = vadd.f32 0.0, %v687
    %v689 = vpop.f32.mrf.mxu0
    %v690 = vpop.f32.mrf.mxu0
    %v691 = vadd.f32 0.0, %v690
    %v692 = vpop.f32.mrf.mxu0
    %693 = vmatprep.mubr.bf16.mxu0 0
    %694 = vmatmul.mubr.bf16.gmra.mxu0 %v594
    %v695 = vpop.f32.mrf.mxu0
    %v696 = vadd.f32 0.0, %v695
    %v697 = vpop.f32.mrf.mxu0
    %v698 = vpop.f32.mrf.mxu0
    %v699 = vadd.f32 0.0, %v698
    %v700 = vpop.f32.mrf.mxu0
    %701 = vmatprep.mubr.bf16.mxu0 0
    %702 = vmatmul.mubr.bf16.gmra.mxu0 %v597
    %v703 = vpop.f32.mrf.mxu0
    %v704 = vadd.f32 0.0, %v703
    %v705 = vpop.f32.mrf.mxu0
    %v706 = vpop.f32.mrf.mxu0
    %v707 = vadd.f32 0.0, %v706
    %v708 = vpop.f32.mrf.mxu0
    %709 = vmatprep.mubr.bf16.mxu0 0
    %710 = vmatmul.mubr.bf16.gmra.mxu0 %v600
    %v711 = vpop.f32.mrf.mxu0
    %v712 = vadd.f32 0.0, %v711
    %v713 = vpop.f32.mrf.mxu0
    %v714 = vpop.f32.mrf.mxu0
    %v715 = vadd.f32 0.0, %v714
    %v716 = vpop.f32.mrf.mxu0
    %717 = vmatprep.mubr.bf16.mxu0 0
    %718 = vmatmul.mubr.bf16.gmra.mxu0 %v603
    %v719 = vpop.f32.mrf.mxu0
    %v720 = vadd.f32 0.0, %v719
    %v721 = vpop.f32.mrf.mxu0
    %v722 = vpop.f32.mrf.mxu0
    %v723 = vadd.f32 0.0, %v722
    %v724 = vpop.f32.mrf.mxu0
    %725 = vmatprep.mubr.bf16.mxu0 0
    %726 = vmatmul.mubr.bf16.gmra.mxu0 %v606
    %v727 = vpop.f32.mrf.mxu0
    %v728 = vadd.f32 0.0, %v727
    %v729 = vpop.f32.mrf.mxu0
    %v730 = vpop.f32.mrf.mxu0
    %v731 = vadd.f32 0.0, %v730
    %v732 = vpop.f32.mrf.mxu0
    %733 = vmatprep.mubr.bf16.mxu0 0
    %734 = vmatmul.mubr.bf16.gmra.mxu0 %v609
    %v735 = vpop.f32.mrf.mxu0
    %v736 = vadd.f32 0.0, %v735
    %v737 = vpop.f32.mrf.mxu0
    %v738 = vpop.f32.mrf.mxu0
    %v739 = vadd.f32 0.0, %v738
    %v740 = vpop.f32.mrf.mxu0
    %741 = vmatprep.mubr.bf16.mxu0 0
    %742 = vmatmul.mubr.bf16.gmra.mxu0 %v612
    %v743 = vpop.f32.mrf.mxu0
    %v744 = vadd.f32 0.0, %v743
    %v745 = vpop.f32.mrf.mxu0
    %v746 = vpop.f32.mrf.mxu0
    %v747 = vadd.f32 0.0, %v746
    %v748 = vpop.f32.mrf.mxu0
    %749 = vmatprep.mubr.bf16.mxu0 0
    %750 = vmatmul.mubr.bf16.gmra.mxu0 %v615
    %v751 = vpop.f32.mrf.mxu0
    %v752 = vadd.f32 0.0, %v751
    %v753 = vpop.f32.mrf.mxu0
    %v754 = vpop.f32.mrf.mxu0
    %v755 = vadd.f32 0.0, %v754
    %v756 = vpop.f32.mrf.mxu0
    %757 = vmatprep.mubr.bf16.mxu0 0
    %758 = vmatmul.mubr.bf16.gmra.mxu0 %v618
    %v759 = vpop.f32.mrf.mxu0
    %v760 = vadd.f32 0.0, %v759
    %v761 = vpop.f32.mrf.mxu0
    %v762 = vpop.f32.mrf.mxu0
    %v763 = vadd.f32 0.0, %v762
    %v764 = vpop.f32.mrf.mxu0
    %765 = vmatprep.mubr.bf16.mxu0 0
    %766 = vmatmul.mubr.bf16.gmra.mxu0 %v621
    %v767 = vpop.f32.mrf.mxu0
    %v768 = vadd.f32 0.0, %v767
    %v769 = vpop.f32.mrf.mxu0
    %v770 = vpop.f32.mrf.mxu0
    %v771 = vadd.f32 0.0, %v770
    %v772 = vpop.f32.mrf.mxu0
    %773 = vmatprep.mubr.bf16.mxu0 0
    %774 = vmatmul.mubr.bf16.gmra.mxu0 %v624
    %v775 = vpop.f32.mrf.mxu0
    %v776 = vadd.f32 0.0, %v775
    %v777 = vpop.f32.mrf.mxu0
    %v778 = vpop.f32.mrf.mxu0
    %v779 = vadd.f32 0.0, %v778
    %v780 = vpop.f32.mrf.mxu0
    %781 = vmatprep.mubr.bf16.mxu0 0
    %782 = vmatmul.mubr.bf16.gmra.mxu0 %v627
    %v783 = vpop.f32.mrf.mxu0
    %v784 = vadd.f32 0.0, %v783
    %v785 = vpop.f32.mrf.mxu0
    %v786 = vpop.f32.mrf.mxu0
    %v787 = vadd.f32 0.0, %v786
    %v788 = vpop.f32.mrf.mxu0
    %789 = vmatprep.mubr.bf16.mxu0 0
    %790 = vmatmul.mubr.bf16.gmra.mxu0 %v630
    %v791 = vpop.f32.mrf.mxu0
    %v792 = vadd.f32 0.0, %v791
    %v793 = vpop.f32.mrf.mxu0
    %v794 = vpop.f32.mrf.mxu0
    %v795 = vadd.f32 0.0, %v794
    %v796 = vpop.f32.mrf.mxu0
    %797 = vmatprep.mubr.bf16.mxu0 0
    %798 = vmatmul.mubr.bf16.gmra.mxu0 %v633
    %v799 = vpop.f32.mrf.mxu0
    %v800 = vadd.f32 0.0, %v799
    %v801 = vpop.f32.mrf.mxu0
    %v802 = vpop.f32.mrf.mxu0
    %v803 = vadd.f32 0.0, %v802
    %v804 = vpop.f32.mrf.mxu0
    %805 = vmatprep.mubr.bf16.mxu0 0
    %806 = vmatmul.mubr.bf16.gmra.mxu0 %v636
    %v807 = vpop.f32.mrf.mxu0
    %v808 = vadd.f32 0.0, %v807
    %v809 = vpop.f32.mrf.mxu0
    %v810 = vpop.f32.mrf.mxu0
    %v811 = vadd.f32 0.0, %v810
    %v812 = vpop.f32.mrf.mxu0
    %813 = vmatprep.mubr.bf16.mxu0 0
    %814 = vmatmul.mubr.bf16.gmra.mxu0 %v639
    %v815 = vpop.f32.mrf.mxu0
    %v816 = vadd.f32 0.0, %v815
    %v817 = vpop.f32.mrf.mxu0
    %v818 = vpop.f32.mrf.mxu0
    %v819 = vadd.f32 0.0, %v818
    %v820 = vpop.f32.mrf.mxu0
    %821 = vdwg.mxu0
    %826 = vrot.lane.b32.xlu0 %v696, 32
    %v827 = vpop.permute.xlu0 %826
    %828 = vrot.lane.b32.xlu0 %v699, 32
    %v829 = vpop.permute.xlu0 %828
    %830 = vrot.lane.b32.xlu0 %v704, 32
    %v831 = vpop.permute.xlu0 %830
    %832 = vrot.lane.b32.xlu0 %v707, 32
    %v833 = vpop.permute.xlu0 %832
    %842 = vrot.lane.b32.xlu0 %v712, 64
    %v843 = vpop.permute.xlu0 %842
    %844 = vrot.lane.b32.xlu0 %v715, 64
    %v845 = vpop.permute.xlu0 %844
    %846 = vrot.lane.b32.xlu0 %v720, 64
    %v847 = vpop.permute.xlu0 %846
    %848 = vrot.lane.b32.xlu0 %v723, 64
    %v849 = vpop.permute.xlu0 %848
    %858 = vrot.lane.b32.xlu0 %v728, 96
    %v859 = vpop.permute.xlu0 %858
    %860 = vrot.lane.b32.xlu0 %v731, 96
    %v861 = vpop.permute.xlu0 %860
    %862 = vrot.lane.b32.xlu0 %v736, 96
    %v863 = vpop.permute.xlu0 %862
    %864 = vrot.lane.b32.xlu0 %v739, 96
    %v865 = vpop.permute.xlu0 %864
    %874 = vrot.lane.b32.xlu0 %v760, 32
    %v875 = vpop.permute.xlu0 %874
    %876 = vrot.lane.b32.xlu0 %v763, 32
    %v877 = vpop.permute.xlu0 %876
    %878 = vrot.lane.b32.xlu0 %v768, 32
    %v879 = vpop.permute.xlu0 %878
    %880 = vrot.lane.b32.xlu0 %v771, 32
    %v881 = vpop.permute.xlu0 %880
    %890 = vrot.lane.b32.xlu0 %v776, 64
    %v891 = vpop.permute.xlu0 %890
    %892 = vrot.lane.b32.xlu0 %v779, 64
    %v893 = vpop.permute.xlu0 %892
    %894 = vrot.lane.b32.xlu0 %v784, 64
    %v895 = vpop.permute.xlu0 %894
    %896 = vrot.lane.b32.xlu0 %v787, 64
    %v897 = vpop.permute.xlu0 %896
    %906 = vrot.lane.b32.xlu0 %v792, 96
    %v907 = vpop.permute.xlu0 %906
    %908 = vrot.lane.b32.xlu0 %v795, 96
    %v909 = vpop.permute.xlu0 %908
    %910 = vrot.lane.b32.xlu0 %v800, 96
    %v911 = vpop.permute.xlu0 %910
    %912 = vrot.lane.b32.xlu0 %v803, 96
    %v913 = vpop.permute.xlu0 %912
    %vm918 = vcmask 261120
    %v919 = vsel %vm918, %v680, %v827
    %v920 = vsel %vm918, %v683, %v829
    %v921 = vsel %vm918, %v688, %v831
    %v922 = vsel %vm918, %v691, %v833
    %vm923 = vcmask 523264
    %v924 = vsel %vm923, %v919, %v843
    %v925 = vsel %vm923, %v920, %v845
    %v926 = vsel %vm923, %v921, %v847
    %v927 = vsel %vm923, %v922, %v849
    %vm928 = vcmask 785408
    %v929 = vsel %vm928, %v924, %v859
    %v930 = vsel %vm928, %v925, %v861
    %v931 = vsel %vm928, %v926, %v863
    %v932 = vsel %vm928, %v927, %v865
    %v933 = vsel %vm918, %v744, %v875
    %v934 = vsel %vm918, %v747, %v877
    %v935 = vsel %vm918, %v752, %v879
    %v936 = vsel %vm918, %v755, %v881
    %v937 = vsel %vm923, %v933, %v891
    %v938 = vsel %vm923, %v934, %v893
    %v939 = vsel %vm923, %v935, %v895
    %v940 = vsel %vm923, %v936, %v897
    %v941 = vsel %vm928, %v937, %v907
    %v942 = vsel %vm928, %v938, %v909
    %v943 = vsel %vm928, %v939, %v911
    %v944 = vsel %vm928, %v940, %v913
    %v945 = vpack.c.bf16 %v930, %v929
    %v946 = vpack.c.bf16 %v942, %v941
    %v947 = vpack.c.bf16 %v811, %v808
    %v948 = vpack.c.bf16 %v932, %v931
    %v949 = vpack.c.bf16 %v944, %v943
    %v950 = vpack.c.bf16 %v819, %v816
    %v951 = vld [vmem:[%s3] sm:$0xf]
    %v952 = vld [vmem:[%s3 + $0x4] sm:$0xf]
    %v953 = vld [vmem:[%s3 + $0x8] sm:$0xf]
    %v954 = vld [vmem:[%s3 + $0xc] sm:$0xf]
    %v955 = vld [vmem:[%s3 + $0x10] sm:$0xf]
    %v956 = vld [vmem:[%s3 + $0x14] sm:$0xf]
    %v957 = vld [vmem:[%s3 + $0x18] sm:$0xf]
    %v958 = vld [vmem:[%s3 + $0x1c] sm:$0xf]
    %v959 = vld [vmem:[%s3 + $0x20] sm:$0xf]
    %v960 = vld [vmem:[%s3 + $0x24] sm:$0xf]
    %v961 = vld [vmem:[%s3 + $0x28] sm:$0xf]
    %v962 = vld [vmem:[%s3 + $0x2c] sm:$0xf]
    %v963 = vld [vmem:[%s3 + $0x30] sm:$0xf]
    %v964 = vld [vmem:[%s3 + $0x34] sm:$0xf]
    %v965 = vld [vmem:[%s3 + $0x38] sm:$0xf]
    %v966 = vld [vmem:[%s3 + $0x3c] sm:$0xf]
    %v967 = vld [vmem:[%s3 + $0x40] sm:$0xf]
    %v968 = vld [vmem:[%s3 + $0x44] sm:$0xf]
    %v969 = vld [vmem:[%s3 + $0x48] sm:$0xf]
    %v970 = vld [vmem:[%s3 + $0x4c] sm:$0xf]
    %v971 = vld [vmem:[%s3 + $0x50] sm:$0xf]
    %v972 = vld [vmem:[%s3 + $0x54] sm:$0xf]
    %v973 = vld [vmem:[%s3 + $0x58] sm:$0xf]
    %v974 = vld [vmem:[%s3 + $0x5c] sm:$0xf]
    %v975 = vld [vmem:[%s3 + $0x60] sm:$0xf]
    %v976 = vld [vmem:[%s3 + $0x64] sm:$0xf]
    %v977 = vld [vmem:[%s3 + $0x68] sm:$0xf]
    %v978 = vld [vmem:[%s3 + $0x6c] sm:$0xf]
    %v979 = vld [vmem:[%s3 + $0x70] sm:$0xf]
    %v980 = vld [vmem:[%s3 + $0x74] sm:$0xf]
    %v981 = vld [vmem:[%s3 + $0x78] sm:$0xf]
    %v982 = vld [vmem:[%s3 + $0x7c] sm:$0xf]
    %v983 = vld [vmem:[%s3 + $0x80] sm:$0xf]
    %v984 = vld [vmem:[%s3 + $0x84] sm:$0xf]
    %v985 = vld [vmem:[%s3 + $0x88] sm:$0xf]
    %v986 = vld [vmem:[%s3 + $0x8c] sm:$0xf]
    %v1023 = vunpack.c.l.b16 %v951
    %v1024 = vunpack.c.l.b16 %v952
    %v1025 = vunpack.c.l.b16 %v953
    %v1026 = vunpack.c.l.b16 %v954
    %v1027 = vunpack.c.l.b16 %v955
    %v1028 = vunpack.c.l.b16 %v956
    %v1029 = vunpack.c.l.b16 %v957
    %v1030 = vunpack.c.l.b16 %v958
    %v1031 = vunpack.c.l.b16 %v959
    %v1032 = vunpack.c.l.b16 %v960
    %v1033 = vunpack.c.l.b16 %v961
    %v1034 = vunpack.c.l.b16 %v962
    %v1035 = vunpack.c.l.b16 %v963
    %v1036 = vunpack.c.l.b16 %v964
    %v1037 = vunpack.c.l.b16 %v965
    %v1038 = vunpack.c.l.b16 %v966
    %v1039 = vunpack.c.l.b16 %v967
    %v1040 = vunpack.c.l.b16 %v968
    %v1041 = vunpack.c.l.b16 %v969
    %v1042 = vunpack.c.l.b16 %v970
    %v1043 = vunpack.c.l.b16 %v971
    %v1044 = vunpack.c.l.b16 %v972
    %v1045 = vunpack.c.l.b16 %v973
    %v1046 = vunpack.c.l.b16 %v974
    %v1047 = vunpack.c.l.b16 %v975
    %v1048 = vunpack.c.l.b16 %v976
    %v1049 = vunpack.c.l.b16 %v977
    %v1050 = vunpack.c.l.b16 %v978
    %v1051 = vunpack.c.l.b16 %v979
    %v1052 = vunpack.c.l.b16 %v980
    %v1053 = vunpack.c.l.b16 %v981
    %v1054 = vunpack.c.l.b16 %v982
    %v1055 = vunpack.c.l.b16 %v983
    %v1056 = vunpack.c.l.b16 %v984
    %v1057 = vunpack.c.l.b16 %v985
    %v1058 = vunpack.c.l.b16 %v986
    %v1059 = vpack.c.b16 %v1024, %v1023
    %v1060 = vpack.c.b16 %v1026, %v1025
    %v1061 = vpack.c.b16 %v1028, %v1027
    %v1062 = vpack.c.b16 %v1030, %v1029
    %v1063 = vpack.c.b16 %v1032, %v1031
    %v1064 = vpack.c.b16 %v1034, %v1033
    %v1065 = vpack.c.b16 %v1036, %v1035
    %v1066 = vpack.c.b16 %v1038, %v1037
    %v1067 = vpack.c.b16 %v1040, %v1039
    %v1068 = vpack.c.b16 %v1042, %v1041
    %v1069 = vpack.c.b16 %v1044, %v1043
    %v1070 = vpack.c.b16 %v1046, %v1045
    %v1071 = vpack.c.b16 %v1048, %v1047
    %v1072 = vpack.c.b16 %v1050, %v1049
    %v1073 = vpack.c.b16 %v1052, %v1051
    %v1074 = vpack.c.b16 %v1054, %v1053
    %v1075 = vpack.c.b16 %v1056, %v1055
    %v1076 = vpack.c.b16 %v1058, %v1057
    %v1096 = vsel %vm918, %v947, 0
    %v1099 = vsel %vm918, %v950, 0
    %1101 = vmatprep.subr.bf16.mxu0 0
    %1102 = vmatpush1.bf16.msra.mxu0 %v1066
    %1103 = vmatprep.subr.bf16.mxu0 0
    %1104 = vmatpush1.bf16.msra.mxu0 %v1065
    %1105 = vmatprep.subr.bf16.mxu0 0
    %1106 = vmatpush1.bf16.msra.mxu0 %v1064
    %1107 = vmatprep.subr.bf16.mxu0 0
    %1108 = vmatpush1.bf16.msra.mxu0 %v1063
    %1109 = vmatprep.subr.bf16.mxu0 0
    %1110 = vmatpush1.bf16.msra.mxu0 %v1062
    %1111 = vmatprep.subr.bf16.mxu0 0
    %1112 = vmatpush1.bf16.msra.mxu0 %v1061
    %1113 = vmatprep.subr.bf16.mxu0 0
    %1114 = vmatpush1.bf16.msra.mxu0 %v1060
    %1115 = vmatprep.subr.bf16.mxu0 0
    %1116 = vmatpush1.bf16.msra.mxu0 %v1059
    %1117 = vmatprep.subr.bf16.mxu0 0
    %1118 = vmatpush2.bf16.msra.mxu0 %v1074
    %1119 = vmatprep.subr.bf16.mxu0 0
    %1120 = vmatpush2.bf16.msra.mxu0 %v1073
    %1121 = vmatprep.subr.bf16.mxu0 0
    %1122 = vmatpush2.bf16.msra.mxu0 %v1072
    %1123 = vmatprep.subr.bf16.mxu0 0
    %1124 = vmatpush2.bf16.msra.mxu0 %v1071
    %1125 = vmatprep.subr.bf16.mxu0 0
    %1126 = vmatpush2.bf16.msra.mxu0 %v1070
    %1127 = vmatprep.subr.bf16.mxu0 0
    %1128 = vmatpush2.bf16.msra.mxu0 %v1069
    %1129 = vmatprep.subr.bf16.mxu0 0
    %1130 = vmatpush2.bf16.msra.mxu0 %v1068
    %1131 = vmatprep.subr.bf16.mxu0 0
    %1132 = vmatpush2.bf16.msra.mxu0 %v1067
    %1133 = vmatprep.mubr.bf16.mxu0 %v946
    %1134 = vmatmul.mubr.bf16.gmra.mxu0 %v945
    %v1135 = vpop.f32.mrf.mxu0
    %v1136 = vadd.f32 0.0, %v1135
    %v1137 = vpop.f32.mrf.mxu0
    %v1138 = vpop.f32.mrf.mxu0
    %v1139 = vadd.f32 0.0, %v1138
    %v1140 = vpop.f32.mrf.mxu0
    %1141 = vmatprep.mubr.bf16.mxu0 %v949
    %1142 = vmatmul.mubr.bf16.gmra.mxu0 %v948
    %v1143 = vpop.f32.mrf.mxu0
    %v1144 = vadd.f32 0.0, %v1143
    %v1145 = vpop.f32.mrf.mxu0
    %v1146 = vpop.f32.mrf.mxu0
    %v1147 = vadd.f32 0.0, %v1146
    %v1148 = vpop.f32.mrf.mxu0
    %1149 = vdwg.mxu0
    %1150 = vmatprep.subr.bf16.mxu0 0
    %1151 = vmatpush1.bf16.msra.mxu0 0
    %1152 = vmatprep.subr.bf16.mxu0 0
    %1153 = vmatpush1.bf16.msra.mxu0 0
    %1154 = vmatprep.subr.bf16.mxu0 0
    %1155 = vmatpush1.bf16.msra.mxu0 0
    %1156 = vmatprep.subr.bf16.mxu0 0
    %1157 = vmatpush1.bf16.msra.mxu0 0
    %1158 = vmatprep.subr.bf16.mxu0 0
    %1159 = vmatpush1.bf16.msra.mxu0 0
    %1160 = vmatprep.subr.bf16.mxu0 0
    %1161 = vmatpush1.bf16.msra.mxu0 0
    %1162 = vmatprep.subr.bf16.mxu0 0
    %1163 = vmatpush1.bf16.msra.mxu0 %v1076
    %1164 = vmatprep.subr.bf16.mxu0 0
    %1165 = vmatpush1.bf16.msra.mxu0 %v1075
    %1166 = vmatprep.subr.bf16.mxu0 0
    %1167 = vmatpush2.bf16.msra.mxu0 0
    %1168 = vmatprep.subr.bf16.mxu0 0
    %1169 = vmatpush2.bf16.msra.mxu0 0
    %1170 = vmatprep.subr.bf16.mxu0 0
    %1171 = vmatpush2.bf16.msra.mxu0 0
    %1172 = vmatprep.subr.bf16.mxu0 0
    %1173 = vmatpush2.bf16.msra.mxu0 0
    %1174 = vmatprep.subr.bf16.mxu0 0
    %1175 = vmatpush2.bf16.msra.mxu0 0
    %1176 = vmatprep.subr.bf16.mxu0 0
    %1177 = vmatpush2.bf16.msra.mxu0 0
    %1178 = vmatprep.subr.bf16.mxu0 0
    %1179 = vmatpush2.bf16.msra.mxu0 0
    %1180 = vmatprep.subr.bf16.mxu0 0
    %1181 = vmatpush2.bf16.msra.mxu0 0
    %1182 = vmatprep.mubr.bf16.mxu0 0
    %1183 = vmatmul.mubr.bf16.gmra.mxu0 %v1096
    %v1184 = vpop.f32.mrf.mxu0
    %v1185 = vadd.f32 %v1136, %v1184
    %v1186 = vpop.f32.mrf.mxu0
    %v1187 = vpop.f32.mrf.mxu0
    %v1188 = vadd.f32 %v1139, %v1187
    %v1189 = vpop.f32.mrf.mxu0
    %1190 = vmatprep.mubr.bf16.mxu0 0
    %1191 = vmatmul.mubr.bf16.gmra.mxu0 %v1099
    %v1192 = vpop.f32.mrf.mxu0
    %v1193 = vadd.f32 %v1144, %v1192
    %v1194 = vpop.f32.mrf.mxu0
    %v1195 = vpop.f32.mrf.mxu0
    %v1196 = vadd.f32 %v1147, %v1195
    %v1197 = vpop.f32.mrf.mxu0
    %1198 = vdwg.mxu0
    %v1199 = vmax.f32 %v1185, %v1188
    %v1200 = vmax.f32 %v1193, %v1196
    %v1201 = vmax.f32 %v1199, %v1200
    %v1202 = vlaneseq
    %v1203 = vshrl.u32 %v1202, 7
    %v1204 = vsub.s32 0, %v1203
    %v1205 = vrot.slane %v29, %v1204
    %v1206 = vadd.f32 %v1201, %v1205
    %v1207 = vmax.f32 %v1206, 0.0
    %v1209 = vrot.slane %v1207, 2
    %1210 = vrot.lane.b32.xlu0 %v1209, 64
    %v1211 = vpop.permute.xlu0 %1210
    %v1213 = vrot.slane %v1207, 4
    %v1215 = vrot.slane %v1207, 6
    %1216 = vrot.lane.b32.xlu0 %v1215, 64
    %v1217 = vpop.permute.xlu0 %1216
    %v1219 = vsel %vm923, %v1207, %v1211
    %v1220 = vsel %vm923, %v1213, %v1217
    %v1221 = vpack.c.bf16 %v1219, %v1219
    %v1222 = vpack.c.bf16 %v1220, %v1220
    %v1223 = vld [vmem:[%s4] sm:$0xf]
    %v1224 = vld [vmem:[%s4 + $0x4] sm:$0xf]
    %v1225 = vld [vmem:[%s4 + $0x8] sm:$0xf]
    %v1226 = vld [vmem:[%s4 + $0xc] sm:$0xf]
    %v1227 = vld [vmem:[%s4 + $0x10] sm:$0xf]
    %v1228 = vld [vmem:[%s4 + $0x14] sm:$0xf]
    %v1229 = vld [vmem:[%s4 + $0x18] sm:$0xf]
    %v1230 = vld [vmem:[%s4 + $0x1c] sm:$0xf]
    %v1231 = vld [vmem:[%s4 + $0x20] sm:$0xf]
    %v1232 = vld [vmem:[%s4 + $0x24] sm:$0xf]
    %v1233 = vld [vmem:[%s4 + $0x28] sm:$0xf]
    %v1234 = vld [vmem:[%s4 + $0x2c] sm:$0xf]
    %v1235 = vld [vmem:[%s4 + $0x30] sm:$0xf]
    %v1236 = vld [vmem:[%s4 + $0x34] sm:$0xf]
    %v1237 = vld [vmem:[%s4 + $0x38] sm:$0xf]
    %v1238 = vld [vmem:[%s4 + $0x3c] sm:$0xf]
    %v1239 = vld [vmem:[%s4 + $0x40] sm:$0xf]
    %v1240 = vld [vmem:[%s4 + $0x44] sm:$0xf]
    %v1241 = vld [vmem:[%s4 + $0x48] sm:$0xf]
    %v1242 = vld [vmem:[%s4 + $0x4c] sm:$0xf]
    %v1243 = vld [vmem:[%s4 + $0x50] sm:$0xf]
    %v1244 = vld [vmem:[%s4 + $0x54] sm:$0xf]
    %v1245 = vld [vmem:[%s4 + $0x58] sm:$0xf]
    %v1246 = vld [vmem:[%s4 + $0x5c] sm:$0xf]
    %v1247 = vld [vmem:[%s4 + $0x60] sm:$0xf]
    %v1248 = vld [vmem:[%s4 + $0x64] sm:$0xf]
    %v1249 = vld [vmem:[%s4 + $0x68] sm:$0xf]
    %v1250 = vld [vmem:[%s4 + $0x6c] sm:$0xf]
    %v1251 = vld [vmem:[%s4 + $0x70] sm:$0xf]
    %v1252 = vld [vmem:[%s4 + $0x74] sm:$0xf]
    %v1253 = vld [vmem:[%s4 + $0x78] sm:$0xf]
    %v1254 = vld [vmem:[%s4 + $0x7c] sm:$0xf]
    %v1255 = vlaneseq
    %v1256 = vshrl.u32 %v1255, 7
    %v1257 = vsub.s32 0, %v1256
    %v1258 = vrot.slane %v30, %v1257
    %v1291 = vunpack.c.l.b16 %v1223
    %v1292 = vunpack.c.l.b16 %v1224
    %v1293 = vunpack.c.l.b16 %v1225
    %v1294 = vunpack.c.l.b16 %v1226
    %v1295 = vunpack.c.l.b16 %v1227
    %v1296 = vunpack.c.l.b16 %v1228
    %v1297 = vunpack.c.l.b16 %v1229
    %v1298 = vunpack.c.l.b16 %v1230
    %v1299 = vunpack.c.l.b16 %v1231
    %v1300 = vunpack.c.l.b16 %v1232
    %v1301 = vunpack.c.l.b16 %v1233
    %v1302 = vunpack.c.l.b16 %v1234
    %v1303 = vunpack.c.l.b16 %v1235
    %v1304 = vunpack.c.l.b16 %v1236
    %v1305 = vunpack.c.l.b16 %v1237
    %v1306 = vunpack.c.l.b16 %v1238
    %v1307 = vunpack.c.l.b16 %v1239
    %v1308 = vunpack.c.l.b16 %v1240
    %v1309 = vunpack.c.l.b16 %v1241
    %v1310 = vunpack.c.l.b16 %v1242
    %v1311 = vunpack.c.l.b16 %v1243
    %v1312 = vunpack.c.l.b16 %v1244
    %v1313 = vunpack.c.l.b16 %v1245
    %v1314 = vunpack.c.l.b16 %v1246
    %v1315 = vunpack.c.l.b16 %v1247
    %v1316 = vunpack.c.l.b16 %v1248
    %v1317 = vunpack.c.l.b16 %v1249
    %v1318 = vunpack.c.l.b16 %v1250
    %v1319 = vunpack.c.l.b16 %v1251
    %v1320 = vunpack.c.l.b16 %v1252
    %v1321 = vunpack.c.l.b16 %v1253
    %v1322 = vunpack.c.l.b16 %v1254
    %v1323 = vpack.c.b16 %v1292, %v1291
    %v1324 = vpack.c.b16 %v1294, %v1293
    %v1325 = vpack.c.b16 %v1296, %v1295
    %v1326 = vpack.c.b16 %v1298, %v1297
    %v1327 = vpack.c.b16 %v1300, %v1299
    %v1328 = vpack.c.b16 %v1302, %v1301
    %v1329 = vpack.c.b16 %v1304, %v1303
    %v1330 = vpack.c.b16 %v1306, %v1305
    %v1331 = vpack.c.b16 %v1308, %v1307
    %v1332 = vpack.c.b16 %v1310, %v1309
    %v1333 = vpack.c.b16 %v1312, %v1311
    %v1334 = vpack.c.b16 %v1314, %v1313
    %v1335 = vpack.c.b16 %v1316, %v1315
    %v1336 = vpack.c.b16 %v1318, %v1317
    %v1337 = vpack.c.b16 %v1320, %v1319
    %v1338 = vpack.c.b16 %v1322, %v1321
    %1355 = vmatprep.subr.bf16.mxu0 0
    %1356 = vmatpush1.bf16.msra.mxu0 %v1330
    %1357 = vmatprep.subr.bf16.mxu0 0
    %1358 = vmatpush1.bf16.msra.mxu0 %v1329
    %1359 = vmatprep.subr.bf16.mxu0 0
    %1360 = vmatpush1.bf16.msra.mxu0 %v1328
    %1361 = vmatprep.subr.bf16.mxu0 0
    %1362 = vmatpush1.bf16.msra.mxu0 %v1327
    %1363 = vmatprep.subr.bf16.mxu0 0
    %1364 = vmatpush1.bf16.msra.mxu0 %v1326
    %1365 = vmatprep.subr.bf16.mxu0 0
    %1366 = vmatpush1.bf16.msra.mxu0 %v1325
    %1367 = vmatprep.subr.bf16.mxu0 0
    %1368 = vmatpush1.bf16.msra.mxu0 %v1324
    %1369 = vmatprep.subr.bf16.mxu0 0
    %1370 = vmatpush1.bf16.msra.mxu0 %v1323
    %1371 = vmatprep.subr.bf16.mxu0 0
    %1372 = vmatpush2.bf16.msra.mxu0 %v1338
    %1373 = vmatprep.subr.bf16.mxu0 0
    %1374 = vmatpush2.bf16.msra.mxu0 %v1337
    %1375 = vmatprep.subr.bf16.mxu0 0
    %1376 = vmatpush2.bf16.msra.mxu0 %v1336
    %1377 = vmatprep.subr.bf16.mxu0 0
    %1378 = vmatpush2.bf16.msra.mxu0 %v1335
    %1379 = vmatprep.subr.bf16.mxu0 0
    %1380 = vmatpush2.bf16.msra.mxu0 %v1334
    %1381 = vmatprep.subr.bf16.mxu0 0
    %1382 = vmatpush2.bf16.msra.mxu0 %v1333
    %1383 = vmatprep.subr.bf16.mxu0 0
    %1384 = vmatpush2.bf16.msra.mxu0 %v1332
    %1385 = vmatprep.subr.bf16.mxu0 0
    %1386 = vmatpush2.bf16.msra.mxu0 %v1331
    %1387 = vmatprep.mubr.bf16.mxu0 %v1222
    %1388 = vmatmul.mubr.bf16.gmra.mxu0 %v1221
    %v1389 = vpop.f32.mrf.mxu0
    %v1390 = vadd.f32 %v1258, %v1389
    %v1391 = vpop.f32.mrf.mxu0
    %v1392 = vpop.f32.mrf.mxu0
    %v1393 = vpop.f32.mrf.mxu0
    %1394 = vdwg.mxu0
    %v1395 = vmax.f32 %v1390, 0.0
    %v1396 = vpack.c.bf16 %v1395, %v1395
    %v1397 = vld [vmem:[%s5] sm:$0xf]
    %v1398 = vld [vmem:[%s5 + $0x4] sm:$0xf]
    %v1399 = vld [vmem:[%s5 + $0x8] sm:$0xf]
    %v1400 = vld [vmem:[%s5 + $0xc] sm:$0xf]
    %v1401 = vld [vmem:[%s5 + $0x10] sm:$0xf]
    %v1402 = vld [vmem:[%s5 + $0x14] sm:$0xf]
    %v1403 = vld [vmem:[%s5 + $0x18] sm:$0xf]
    %v1404 = vld [vmem:[%s5 + $0x1c] sm:$0xf]
    %v1405 = vld [vmem:[%s5 + $0x20] sm:$0xf]
    %v1406 = vld [vmem:[%s5 + $0x24] sm:$0xf]
    %v1407 = vld [vmem:[%s5 + $0x28] sm:$0xf]
    %v1408 = vld [vmem:[%s5 + $0x2c] sm:$0xf]
    %v1409 = vld [vmem:[%s5 + $0x30] sm:$0x3]
    %v1410 = vlaneseq
    %v1411 = vshrl.u32 %v1410, 7
    %v1412 = vsub.s32 0, %v1411
    %v1413 = vrot.slane %v31, %v1412
    %v1427 = vunpack.c.l.b16 %v1397
    %v1428 = vunpack.c.l.b16 %v1398
    %v1429 = vunpack.c.l.b16 %v1399
    %v1430 = vunpack.c.l.b16 %v1400
    %v1431 = vunpack.c.l.b16 %v1401
    %v1432 = vunpack.c.l.b16 %v1402
    %v1433 = vunpack.c.l.b16 %v1403
    %v1434 = vunpack.c.l.b16 %v1404
    %v1435 = vunpack.c.l.b16 %v1405
    %v1436 = vunpack.c.l.b16 %v1406
    %v1437 = vunpack.c.l.b16 %v1407
    %v1438 = vunpack.c.l.b16 %v1408
    %v1439 = vunpack.c.l.b16 %v1409
    %v1440 = vpack.c.b16 %v1428, %v1427
    %v1441 = vpack.c.b16 %v1430, %v1429
    %v1442 = vpack.c.b16 %v1432, %v1431
    %v1443 = vpack.c.b16 %v1434, %v1433
    %v1444 = vpack.c.b16 %v1436, %v1435
    %v1445 = vpack.c.b16 %v1438, %v1437
    %v1446 = vpack.c.b16 %v1439, %v1439
    %vm1453 = vcmask 818176
    %v1455 = vsel %vm1453, %v1396, 0
    %vm1457 = vcmask 1041408
    %v1459 = vsel %vm1457, %v1446, 0
    %1461 = vmatprep.subr.bf16.mxu0 0
    %1462 = vmatpush1.bf16.msra.mxu0 0
    %1463 = vmatprep.subr.bf16.mxu0 0
    %1464 = vmatpush1.bf16.msra.mxu0 %v1459
    %1465 = vmatprep.subr.bf16.mxu0 0
    %1466 = vmatpush1.bf16.msra.mxu0 %v1445
    %1467 = vmatprep.subr.bf16.mxu0 0
    %1468 = vmatpush1.bf16.msra.mxu0 %v1444
    %1469 = vmatprep.subr.bf16.mxu0 0
    %1470 = vmatpush1.bf16.msra.mxu0 %v1443
    %1471 = vmatprep.subr.bf16.mxu0 0
    %1472 = vmatpush1.bf16.msra.mxu0 %v1442
    %1473 = vmatprep.subr.bf16.mxu0 0
    %1474 = vmatpush1.bf16.msra.mxu0 %v1441
    %1475 = vmatprep.subr.bf16.mxu0 0
    %1476 = vmatpush1.bf16.msra.mxu0 %v1440
    %1477 = vmatprep.subr.bf16.mxu0 0
    %1478 = vmatpush2.bf16.msra.mxu0 0
    %1479 = vmatprep.subr.bf16.mxu0 0
    %1480 = vmatpush2.bf16.msra.mxu0 0
    %1481 = vmatprep.subr.bf16.mxu0 0
    %1482 = vmatpush2.bf16.msra.mxu0 0
    %1483 = vmatprep.subr.bf16.mxu0 0
    %1484 = vmatpush2.bf16.msra.mxu0 0
    %1485 = vmatprep.subr.bf16.mxu0 0
    %1486 = vmatpush2.bf16.msra.mxu0 0
    %1487 = vmatprep.subr.bf16.mxu0 0
    %1488 = vmatpush2.bf16.msra.mxu0 0
    %1489 = vmatprep.subr.bf16.mxu0 0
    %1490 = vmatpush2.bf16.msra.mxu0 0
    %1491 = vmatprep.subr.bf16.mxu0 0
    %1492 = vmatpush2.bf16.msra.mxu0 0
    %1493 = vmatprep.mubr.bf16.mxu0 0
    %1494 = vmatmul.mubr.bf16.gmra.mxu0 %v1455
    %v1495 = vpop.f32.mrf.mxu0
    %v1496 = vadd.f32 %v1413, %v1495
    %v1497 = vpop.f32.mrf.mxu0
    %v1498 = vpop.f32.mrf.mxu0
    %v1499 = vpop.f32.mrf.mxu0
    %1500 = vdwg.mxu0
    %vm1501 = vcmask 9216
    %1502 = vst.msk [vmem:[#allocation2] sm:$0x3] %vm1501, %v1496
    // Predicated region
    $region30: #{convnet_forward.1} parent=1 // pred_check
      _
    $region31: #{convnet_forward.1} parent=1 // pred_check_branch
      %1504 = sbr.rel (0) target = $region33
    $region32: #{convnet_forward.1} parent=1 // pred_region
      %s1506 = ssub.s32 32, 32
      %1507 = vsyncadd [#allocation3], %s1506
      %s1509 = sshll.u32 [#allocation2], 4
      %s1510 = int_to_ptr.vmem [resolvable:$true] %s1509
      %1512 = dma.vmem_to_hbm [thread:$0]  %s1510, 32, %s7, [#allocation3]
    $region33: #{convnet_forward.1} parent=1 // pred_fallthru
      _
    // Predicated region
    $region34: #{convnet_forward.1} parent=1 // pred_check
      _
    $region35: #{convnet_forward.1} parent=1 // pred_check_branch
      %1514 = sbr.rel (0) target = $region37
    $region36: #{convnet_forward.1} parent=1 // pred_region
      %1515 = dma.done [#allocation3], 32
    $region37: #{convnet_forward.1} parent=1 // pred_fallthru
      _
    %1516 = vsyncpa [#allocation3], 1

</llo_original>
